<compile_context>
chip_gen: v6e
topology: v6e:2x2x1
jax: 0.10.0
libtpu: 0.0.40
codegen_flags: <defaults>
</compile_context>

<pallas_src>
import math
from functools import partial

import jax
import jax.numpy as jnp
from jax import lax
from jax.experimental import pallas as pl
from jax.experimental.pallas import tpu as pltpu


def _pick_tile(dim, pref, align):
    """Largest `align`-multiple divisor of `dim` that is <= pref, else full dim."""
    if dim <= pref:
        return dim
    t = (pref // align) * align
    while t >= align:
        if dim % t == 0:
            return t
        t -= align
    return dim  # fall back to an untiled axis


# --------------------------- tiled linear kernel -----------------------------

def _matmul_kernel(x_ref, w_ref, o_ref, acc_ref):
    @pl.when(pl.program_id(2) == 0)
    def _():
        acc_ref[...] = jnp.zeros_like(acc_ref)

    acc_ref[...] += jnp.dot(x_ref[...], w_ref[...],
                            preferred_element_type=jnp.float32)

    @pl.when(pl.program_id(2) == pl.num_programs(2) - 1)
    def _():
        o_ref[...] = acc_ref[...].astype(o_ref.dtype)


def _matmul_bias_kernel(x_ref, w_ref, b_ref, o_ref, acc_ref):
    @pl.when(pl.program_id(2) == 0)
    def _():
        acc_ref[...] = jnp.zeros_like(acc_ref)

    acc_ref[...] += jnp.dot(x_ref[...], w_ref[...],
                            preferred_element_type=jnp.float32)

    @pl.when(pl.program_id(2) == pl.num_programs(2) - 1)
    def _():
        o_ref[...] = (acc_ref[...] + b_ref[...]).astype(o_ref.dtype)


def linear(x, w, b=None, *, tm=256, tn=256, tk=512):
    """y = x @ w (+ b).  Grid-tiled matmul; bias DMA/add skipped when b is None."""
    M, K = x.shape
    N = w.shape[1]
    tm = _pick_tile(M, tm, 8)
    tn = _pick_tile(N, tn, 128)
    tk = _pick_tile(K, tk, 128)
    grid = (M // tm, N // tn, K // tk)
    x_spec = pl.BlockSpec((tm, tk), lambda i, j, k: (i, k))
    w_spec = pl.BlockSpec((tk, tn), lambda i, j, k: (k, j))
    o_spec = pl.BlockSpec((tm, tn), lambda i, j, k: (i, j))
    scratch = [pltpu.VMEM((tm, tn), jnp.float32)]
    cparams = pltpu.CompilerParams(
        dimension_semantics=("parallel", "parallel", "arbitrary"))
    if b is None:
        return pl.pallas_call(
            _matmul_kernel,
            out_shape=jax.ShapeDtypeStruct((M, N), x.dtype),
            grid=grid,
            in_specs=[x_spec, w_spec],
            out_specs=o_spec,
            scratch_shapes=scratch,
            compiler_params=cparams,
        )(x, w)
    b_spec = pl.BlockSpec((1, tn), lambda i, j, k: (0, j))
    return pl.pallas_call(
        _matmul_bias_kernel,
        out_shape=jax.ShapeDtypeStruct((M, N), x.dtype),
        grid=grid,
        in_specs=[x_spec, w_spec, b_spec],
        out_specs=o_spec,
        scratch_shapes=scratch,
        compiler_params=cparams,
    )(x, w, b.reshape(1, N))


# ------------- fused sr-conv matmul + LayerNorm + kv projection --------------

def _make_sr_ln_kv_kernel(eps, has_kvb):
    def kernel(*refs):
        if has_kvb:
            (p_ref, sw_ref, sb_ref, g_ref, bt_ref,
             kvw_ref, kvb_ref, o_ref, acc_ref) = refs
        else:
            (p_ref, sw_ref, sb_ref, g_ref, bt_ref,
             kvw_ref, o_ref, acc_ref) = refs
            kvb_ref = None

        @pl.when(pl.program_id(1) == 0)
        def _():
            acc_ref[...] = jnp.zeros_like(acc_ref)

        acc_ref[...] += jnp.dot(p_ref[...], sw_ref[...],
                                preferred_element_type=jnp.float32)

        @pl.when(pl.program_id(1) == pl.num_programs(1) - 1)
        def _():
            y = acc_ref[...] + sb_ref[...]
            mu = jnp.mean(y, axis=-1, keepdims=True)
            var = jnp.mean((y - mu) ** 2, axis=-1, keepdims=True)
            yn = (y - mu) * lax.rsqrt(var + eps)
            yn = yn * g_ref[...] + bt_ref[...]
            kv = jnp.dot(yn, kvw_ref[...], preferred_element_type=jnp.float32)
            if kvb_ref is not None:
                kv = kv + kvb_ref[...]
            o_ref[...] = kv.astype(o_ref.dtype)

    return kernel


def sr_conv_ln_kv(patches, sr_w, sr_b, ln_g, ln_b, kv_w, kv_b,
                  *, eps=1e-5, tm=256, tk=512):
    """kv = LayerNorm(patches @ sr_w + sr_b) @ kv_w (+ kv_b), one HBM pass."""
    M, K = patches.shape
    C = sr_w.shape[1]
    C2 = kv_w.shape[1]
    tm = _pick_tile(M, tm, 8)
    tk = _pick_tile(K, tk, 128)
    grid = (M // tm, K // tk)
    has_kvb = kv_b is not None
    inputs = [patches, sr_w, sr_b.reshape(1, C), ln_g.reshape(1, C),
              ln_b.reshape(1, C), kv_w]
    in_specs = [
        pl.BlockSpec((tm, tk), lambda i, k: (i, k)),
        pl.BlockSpec((tk, C), lambda i, k: (k, 0)),
        pl.BlockSpec((1, C), lambda i, k: (0, 0)),
        pl.BlockSpec((1, C), lambda i, k: (0, 0)),
        pl.BlockSpec((1, C), lambda i, k: (0, 0)),
        pl.BlockSpec((C, C2), lambda i, k: (0, 0)),
    ]
    if has_kvb:
        inputs.append(kv_b.reshape(1, C2))
        in_specs.append(pl.BlockSpec((1, C2), lambda i, k: (0, 0)))
    return pl.pallas_call(
        _make_sr_ln_kv_kernel(eps, has_kvb),
        out_shape=jax.ShapeDtypeStruct((M, C2), patches.dtype),
        grid=grid,
        in_specs=in_specs,
        out_specs=pl.BlockSpec((tm, C2), lambda i, k: (i, 0)),
        scratch_shapes=[pltpu.VMEM((tm, C), jnp.float32)],
        compiler_params=pltpu.CompilerParams(
            dimension_semantics=("parallel", "arbitrary")),
    )(*inputs)


# ------------- fused q-projection + multi-head attention + out-proj ----------

_NT_DIMS = (((1,), (1,)), ((), ()))  # contract last dims of both operands


def _make_attn_kernel(num_heads, has_qb):
    def kernel(*refs):
        if has_qb:
            x_ref, qw_ref, qb_ref, kv_ref, pw_ref, pb_ref, o_ref = refs
        else:
            x_ref, qw_ref, kv_ref, pw_ref, pb_ref, o_ref = refs
            qb_ref = None

        C = x_ref.shape[-1]
        hd = C // num_heads

        # q projection (scale pre-folded into qw/qb); stays in VMEM/vregs.
        q = jnp.dot(x_ref[0], qw_ref[...], preferred_element_type=jnp.float32)
        if qb_ref is not None:
            q = q + qb_ref[...]

        kv = kv_ref[0].astype(jnp.float32)          # (Nk, 2C); k = [:, :C], v = [:, C:]

        outs = []
        for h in range(num_heads):                  # static unroll over heads
            lo = h * hd
            qh = q[:, lo:lo + hd]
            kh = kv[:, lo:lo + hd]
            vh = kv[:, C + lo:C + lo + hd]
            s = lax.dot_general(qh, kh, _NT_DIMS,
                                preferred_element_type=jnp.float32)   # (tq, Nk), NT
            m = jnp.max(s, axis=-1, keepdims=True)
            p = jnp.exp(s - m)
            l = jnp.sum(p, axis=-1, keepdims=True)
            oh = jnp.dot(p, vh, preferred_element_type=jnp.float32)   # (tq, hd)
            # normalize AFTER P@V (tq*hd muls, not tq*Nk) with an EUP reciprocal
            outs.append(oh * pl.reciprocal(l, approx=True))

        o = jnp.concatenate(outs, axis=-1)          # PyTorch head-concat layout
        proj = jnp.dot(o, pw_ref[...],
                       preferred_element_type=jnp.float32) + pb_ref[...]
        o_ref[0] = proj.astype(o_ref.dtype)

    return kernel


def attention_fused(x, q_w, q_b, kv, proj_w, proj_b, num_heads, scale, *, tq=256):
    """out = proj( MHA( x @ q_w*scale (+q_b*scale), kv ) ) + proj_b."""
    B, N, C = x.shape
    Nk = kv.shape[1]
    tq = _pick_tile(N, tq, 8)
    grid = (B, N // tq)
    has_qb = q_b is not None

    inputs = [x, q_w * scale]
    in_specs = [
        pl.BlockSpec((1, tq, C), lambda b, i: (b, i, 0)),
        pl.BlockSpec((C, C), lambda b, i: (0, 0)),
    ]
    if has_qb:
        inputs.append((q_b * scale).reshape(1, C))
        in_specs.append(pl.BlockSpec((1, C), lambda b, i: (0, 0)))
    inputs += [kv, proj_w, proj_b.reshape(1, C)]
    in_specs += [
        pl.BlockSpec((1, Nk, 2 * C), lambda b, i: (b, 0, 0)),  # DMA'd once per batch
        pl.BlockSpec((C, C), lambda b, i: (0, 0)),
        pl.BlockSpec((1, C), lambda b, i: (0, 0)),
    ]
    return pl.pallas_call(
        _make_attn_kernel(num_heads, has_qb),
        out_shape=jax.ShapeDtypeStruct((B, N, C), x.dtype),
        grid=grid,
        in_specs=in_specs,
        out_specs=pl.BlockSpec((1, tq, C), lambda b, i: (b, i, 0)),
        compiler_params=pltpu.CompilerParams(
            dimension_semantics=("parallel", "parallel")),
    )(*inputs)


# ------------------------------ Module wrapper ------------------------------

def init_params(key, dim, num_heads, sr_ratio, qkv_bias=False):
    ks = jax.random.split(key, 6)
    std = 0.02
    p = {
        "q_w": jax.random.normal(ks[0], (dim, dim), jnp.float32) * std,
        "q_b": jnp.zeros((dim,), jnp.float32),          # used only if qkv_bias
        "kv_w": jax.random.normal(ks[1], (dim, 2 * dim), jnp.float32) * std,
        "kv_b": jnp.zeros((2 * dim,), jnp.float32),     # used only if qkv_bias
        "proj_w": jax.random.normal(ks[2], (dim, dim), jnp.float32) * std,
        "proj_b": jnp.zeros((dim,), jnp.float32),
    }
    if sr_ratio > 1:
        fan_out = sr_ratio * sr_ratio * dim
        conv_std = math.sqrt(2.0 / fan_out)
        # PyTorch conv weight (C_out, C_in, k, k) -> matmul weight (C_in*k*k, C_out)
        w_conv = jax.random.normal(
            ks[3], (dim, dim, sr_ratio, sr_ratio), jnp.float32) * conv_std
        p["sr_w"] = w_conv.reshape(dim, dim * sr_ratio * sr_ratio).T
        p["sr_b"] = jnp.zeros((dim,), jnp.float32)
        p["ln_g"] = jnp.ones((dim,), jnp.float32)
        p["ln_b"] = jnp.zeros((dim,), jnp.float32)
    return p


def pvt_attention(x, H, W, params, num_heads, sr_ratio,
                  qkv_bias=False, qk_scale=None):
    B, N, C = x.shape
    hd = C // num_heads
    scale = qk_scale or hd ** (-0.5)

    q_b = params["q_b"] if qkv_bias else None
    kv_b = params["kv_b"] if qkv_bias else None

    if sr_ratio > 1:
        # TODO(synk): im2col patch extraction for the stride-sr conv is XLA
        # reshape/transpose glue; conv + LayerNorm + kv-proj run in one kernel.
        x_ = x.transpose(0, 2, 1).reshape(B, C, H, W)
        Hs, Ws = H // sr_ratio, W // sr_ratio
        patches = (x_.reshape(B, C, Hs, sr_ratio, Ws, sr_ratio)
                     .transpose(0, 2, 4, 1, 3, 5)
                     .reshape(B * Hs * Ws, C * sr_ratio * sr_ratio))
        kv = sr_conv_ln_kv(patches, params["sr_w"], params["sr_b"],
                           params["ln_g"], params["ln_b"],
                           params["kv_w"], kv_b)            # (B*Nk, 2C)
        Nk = Hs * Ws
    else:
        kv = linear(x.reshape(B * N, C), params["kv_w"], kv_b)   # (B*N, 2C)
        Nk = N

    kv = kv.reshape(B, Nk, 2 * C)
    # q-proj + softmax(QK^T*scale)V + out-proj fused; q / attn output never hit HBM.
    return attention_fused(x, params["q_w"], q_b, kv,
                           params["proj_w"], params["proj_b"], num_heads, scale)


# Pure-JAX reference for a correctness sanity check.
def reference(x, H, W, p, num_heads, sr_ratio, qkv_bias=False):
    B, N, C = x.shape
    hd = C // num_heads
    scale = hd ** (-0.5)
    q = x.reshape(B * N, C) @ p["q_w"]
    if qkv_bias:
        q = q + p["q_b"]
    q = q.reshape(B, N, num_heads, hd).transpose(0, 2, 1, 3)
    if sr_ratio > 1:
        x_ = x.transpose(0, 2, 1).reshape(B, C, H, W)
        Hs, Ws = H // sr_ratio, W // sr_ratio
        patches = (x_.reshape(B, C, Hs, sr_ratio, Ws, sr_ratio)
                     .transpose(0, 2, 4, 1, 3, 5)
                     .reshape(B * Hs * Ws, C * sr_ratio * sr_ratio))
        x_sr = patches @ p["sr_w"] + p["sr_b"]
        mu = x_sr.mean(-1, keepdims=True)
        var = ((x_sr - mu) ** 2).mean(-1, keepdims=True)
        x_sr = (x_sr - mu) / jnp.sqrt(var + 1e-5) * p["ln_g"] + p["ln_b"]
        kv_in, Nk = x_sr, Hs * Ws
    else:
        kv_in, Nk = x.reshape(B * N, C), N
    kv = kv_in @ p["kv_w"]
    if qkv_bias:
        kv = kv + p["kv_b"]
    kv = kv.reshape(B, Nk, 2, num_heads, hd).transpose(2, 0, 3, 1, 4)
    k, v = kv[0], kv[1]
    attn = jax.nn.softmax(q @ k.transpose(0, 1, 3, 2) * scale, axis=-1)
    o = (attn @ v).transpose(0, 2, 1, 3).reshape(B * N, C)
    return (o @ p["proj_w"] + p["proj_b"]).reshape(B, N, C)


if __name__ == "__main__":
    B, H, W, C = 2, 8, 8, 32
    num_heads = 4
    N = H * W

    key = jax.random.PRNGKey(0)
    kx, kp1, kp2 = jax.random.split(key, 3)
    x = jax.random.normal(kx, (B, N, C), jnp.float32)

    # sr_ratio = 2 path (fused conv+LN+kv kernel + fused attention kernel)
    params2 = init_params(kp1, C, num_heads, sr_ratio=2, qkv_bias=False)
    out2 = jax.block_until_ready(pvt_attention(x, H, W, params2, num_heads, 2))
    ref2 = reference(x, H, W, params2, num_heads, 2)
    assert out2.shape == (B, N, C)
    # tolerance accounts for the approximate (EUP) reciprocal in the softmax norm
    assert jnp.allclose(out2, ref2, atol=2e-2, rtol=2e-2), "mismatch (sr=2)"

    # sr_ratio = 1 path (plain kv matmul + fused attention kernel)
    params1 = init_params(kp2, C, num_heads, sr_ratio=1, qkv_bias=False)
    out1 = jax.block_until_ready(pvt_attention(x, H, W, params1, num_heads, 1))
    ref1 = reference(x, H, W, params1, num_heads, 1)
    assert out1.shape == (B, N, C)
    assert jnp.allclose(out1, ref1, atol=2e-2, rtol=2e-2), "mismatch (sr=1)"

    print("KERNEL_OK")
</pallas_src>

<mosaic_0001>
module attributes {stable_mosaic.version = 11 : i64} {
  func.func @kernel(%arg0: i32, %arg1: i32, %arg2: memref<32x128xf32, #tpu.memory_space<vmem>>, %arg3: memref<128x32xf32, #tpu.memory_space<vmem>>, %arg4: memref<1x32xf32, #tpu.memory_space<vmem>>, %arg5: memref<1x32xf32, #tpu.memory_space<vmem>>, %arg6: memref<1x32xf32, #tpu.memory_space<vmem>>, %arg7: memref<32x64xf32, #tpu.memory_space<vmem>>, %arg8: memref<32x64xf32, #tpu.memory_space<vmem>>, %arg9: memref<32x32xf32, #tpu.memory_space<vmem>>) attributes {dimension_semantics = [#tpu.dimension_semantics<parallel>, #tpu.dimension_semantics<arbitrary>], iteration_bounds = array<i64: 1, 1>, scalar_prefetch = 0 : i64, scratch_operands = 1 : i64, tpu.core_type = #tpu.core_type<tc>, window_params = [{transform_indices = @transform_0, window_bounds = array<i64: 32, 128>}, {transform_indices = @transform_1, window_bounds = array<i64: 128, 32>}, {pipeline_mode = #tpu.pipeline_mode<synchronous>, transform_indices = @transform_2, window_bounds = array<i64: 1, 32>}, {pipeline_mode = #tpu.pipeline_mode<synchronous>, transform_indices = @transform_3, window_bounds = array<i64: 1, 32>}, {pipeline_mode = #tpu.pipeline_mode<synchronous>, transform_indices = @transform_4, window_bounds = array<i64: 1, 32>}, {pipeline_mode = #tpu.pipeline_mode<synchronous>, transform_indices = @transform_5, window_bounds = array<i64: 32, 64>}, {transform_indices = @transform_6, window_bounds = array<i64: 32, 64>}]} {
    %c0_i32 = arith.constant 0 : i32
    %0 = arith.cmpi eq, %arg1, %c0_i32 : i32
    %1 = arith.extui %0 : i1 to i32
    %c0_i32_0 = arith.constant 0 : i32
    %2 = arith.cmpi ne, %1, %c0_i32_0 : i32
    scf.if %2 {
      %cst_10 = arith.constant 0.000000e+00 : f32
      %12 = vector.broadcast %cst_10 : f32 to vector<32x32xf32>
      %c0_11 = arith.constant 0 : index
      %c0_12 = arith.constant 0 : index
      %13 = vector.load %arg9[%c0_11, %c0_12] : memref<32x32xf32, #tpu.memory_space<vmem>>, vector<32x32xf32>
      tpu.vector_store %arg9[%c0_11, %c0_12], %12 {strides = array<i32>} : memref<32x32xf32, #tpu.memory_space<vmem>>, vector<32x32xf32>,
    } else {
    }
    %c0 = arith.constant 0 : index
    %c0_1 = arith.constant 0 : index
    %3 = vector.load %arg9[%c0, %c0_1] : memref<32x32xf32, #tpu.memory_space<vmem>>, vector<32x32xf32>
    %c0_2 = arith.constant 0 : index
    %c0_3 = arith.constant 0 : index
    %4 = vector.load %arg2[%c0_2, %c0_3] : memref<32x128xf32, #tpu.memory_space<vmem>>, vector<32x128xf32>
    %c0_4 = arith.constant 0 : index
    %c0_5 = arith.constant 0 : index
    %5 = vector.load %arg3[%c0_4, %c0_5] : memref<128x32xf32, #tpu.memory_space<vmem>>, vector<128x32xf32>
    %cst = arith.constant dense<0.000000e+00> : vector<32x32xf32>
    %6 = tpu.matmul %4, %5, %cst {dimension_numbers = #tpu.dot_dimension_numbers<[1], [0], [0], [1], [0, 0, 1, 1], [], []>} : vector<32x128xf32>, vector<128x32xf32>, vector<32x32xf32> -> vector<32x32xf32>
    %7 = arith.addf %3, %6 : vector<32x32xf32>
    %c0_6 = arith.constant 0 : index
    %c0_7 = arith.constant 0 : index
    %8 = vector.load %arg9[%c0_6, %c0_7] : memref<32x32xf32, #tpu.memory_space<vmem>>, vector<32x32xf32>
    tpu.vector_store %arg9[%c0_6, %c0_7], %7 {strides = array<i32>} : memref<32x32xf32, #tpu.memory_space<vmem>>, vector<32x32xf32>,
    %c0_i32_8 = arith.constant 0 : i32
    %9 = arith.cmpi eq, %arg1, %c0_i32_8 : i32
    %10 = arith.extui %9 : i1 to i32
    %c0_i32_9 = arith.constant 0 : i32
    %11 = arith.cmpi ne, %10, %c0_i32_9 : i32
    scf.if %11 {
      %c0_10 = arith.constant 0 : index
      %c0_11 = arith.constant 0 : index
      %12 = vector.load %arg9[%c0_10, %c0_11] : memref<32x32xf32, #tpu.memory_space<vmem>>, vector<32x32xf32>
      %c0_12 = arith.constant 0 : index
      %c0_13 = arith.constant 0 : index
      %13 = vector.load %arg4[%c0_12, %c0_13] : memref<1x32xf32, #tpu.memory_space<vmem>>, vector<1x32xf32>
      %14 = vector.broadcast %13 : vector<1x32xf32> to vector<32x32xf32>
      %15 = arith.addf %12, %14 : vector<32x32xf32>
      %cst_14 = arith.constant dense<0.000000e+00> : vector<32xf32>
      %16 = vector.multi_reduction <add>, %15, %cst_14 [1] : vector<32x32xf32> to vector<32xf32>
      %17 = vector.shape_cast %16 : vector<32xf32> to vector<32x1xf32>
      %cst_15 = arith.constant 3.200000e+01 : f32
      %18 = vector.broadcast %cst_15 : f32 to vector<32x1xf32>
      %19 = arith.divf %17, %18 : vector<32x1xf32>
      %20 = vector.broadcast %19 : vector<32x1xf32> to vector<32x32xf32>
      %21 = arith.subf %15, %20 : vector<32x32xf32>
      %22 = arith.mulf %21, %21 : vector<32x32xf32>
      %cst_16 = arith.constant dense<0.000000e+00> : vector<32xf32>
      %23 = vector.multi_reduction <add>, %22, %cst_16 [1] : vector<32x32xf32> to vector<32xf32>
      %24 = vector.shape_cast %23 : vector<32xf32> to vector<32x1xf32>
      %cst_17 = arith.constant 3.200000e+01 : f32
      %25 = vector.broadcast %cst_17 : f32 to vector<32x1xf32>
      %26 = arith.divf %24, %25 : vector<32x1xf32>
      %27 = vector.broadcast %19 : vector<32x1xf32> to vector<32x32xf32>
      %28 = arith.subf %15, %27 : vector<32x32xf32>
      %cst_18 = arith.constant 9.99999974E-6 : f32
      %29 = vector.broadcast %cst_18 : f32 to vector<32x1xf32>
      %30 = arith.addf %26, %29 : vector<32x1xf32>
      %31 = math.rsqrt %30 : vector<32x1xf32>
      %32 = vector.broadcast %31 : vector<32x1xf32> to vector<32x32xf32>
      %33 = arith.mulf %28, %32 : vector<32x32xf32>
      %c0_19 = arith.constant 0 : index
      %c0_20 = arith.constant 0 : index
      %34 = vector.load %arg5[%c0_19, %c0_20] : memref<1x32xf32, #tpu.memory_space<vmem>>, vector<1x32xf32>
      %35 = vector.broadcast %34 : vector<1x32xf32> to vector<32x32xf32>
      %36 = arith.mulf %33, %35 : vector<32x32xf32>
      %c0_21 = arith.constant 0 : index
      %c0_22 = arith.constant 0 : index
      %37 = vector.load %arg6[%c0_21, %c0_22] : memref<1x32xf32, #tpu.memory_space<vmem>>, vector<1x32xf32>
      %38 = vector.broadcast %37 : vector<1x32xf32> to vector<32x32xf32>
      %39 = arith.addf %36, %38 : vector<32x32xf32>
      %c0_23 = arith.constant 0 : index
      %c0_24 = arith.constant 0 : index
      %40 = vector.load %arg7[%c0_23, %c0_24] : memref<32x64xf32, #tpu.memory_space<vmem>>, vector<32x64xf32>
      %cst_25 = arith.constant dense<0.000000e+00> : vector<32x64xf32>
      %41 = tpu.matmul %39, %40, %cst_25 {dimension_numbers = #tpu.dot_dimension_numbers<[1], [0], [0], [1], [0, 0, 1, 1], [], []>} : vector<32x32xf32>, vector<32x64xf32>, vector<32x64xf32> -> vector<32x64xf32>
      %c0_26 = arith.constant 0 : index
      %c0_27 = arith.constant 0 : index
      %42 = vector.load %arg8[%c0_26, %c0_27] : memref<32x64xf32, #tpu.memory_space<vmem>>, vector<32x64xf32>
      tpu.vector_store %arg8[%c0_26, %c0_27], %41 {strides = array<i32>} : memref<32x64xf32, #tpu.memory_space<vmem>>, vector<32x64xf32>,
    } else {
    }
    return
  }
  func.func @transform_0(%arg0: i32, %arg1: i32) -> (i32, i32) {
    %c0_i32 = arith.constant 0 : i32
    return %arg0, %arg1 : i32, i32
  }
  func.func @transform_1(%arg0: i32, %arg1: i32) -> (i32, i32) {
    %c0_i32 = arith.constant 0 : i32
    %c0_i32_0 = arith.constant 0 : i32
    return %arg1, %c0_i32 : i32, i32
  }
  func.func @transform_2(%arg0: i32, %arg1: i32) -> (i32, i32) {
    %c0_i32 = arith.constant 0 : i32
    %c0_i32_0 = arith.constant 0 : i32
    %c0_i32_1 = arith.constant 0 : i32
    return %c0_i32, %c0_i32_0 : i32, i32
  }
  func.func @transform_3(%arg0: i32, %arg1: i32) -> (i32, i32) {
    %c0_i32 = arith.constant 0 : i32
    %c0_i32_0 = arith.constant 0 : i32
    %c0_i32_1 = arith.constant 0 : i32
    return %c0_i32, %c0_i32_0 : i32, i32
  }
  func.func @transform_4(%arg0: i32, %arg1: i32) -> (i32, i32) {
    %c0_i32 = arith.constant 0 : i32
    %c0_i32_0 = arith.constant 0 : i32
    %c0_i32_1 = arith.constant 0 : i32
    return %c0_i32, %c0_i32_0 : i32, i32
  }
  func.func @transform_5(%arg0: i32, %arg1: i32) -> (i32, i32) {
    %c0_i32 = arith.constant 0 : i32
    %c0_i32_0 = arith.constant 0 : i32
    %c0_i32_1 = arith.constant 0 : i32
    return %c0_i32, %c0_i32_0 : i32, i32
  }
  func.func @transform_6(%arg0: i32, %arg1: i32) -> (i32, i32) {
    %c0_i32 = arith.constant 0 : i32
    %c0_i32_0 = arith.constant 0 : i32
    return %arg0, %c0_i32 : i32, i32
  }
}

</mosaic_0001>

<llo_original>
// kernel: tpu_custom_call.1
$region0: #{tpu_custom_call.1}
  #allocation0 [shape = 'u32[]', space=smem, size = 0x4, offset = 0x4, fixed_abs, tag = 'smem constant byte address 0x4 - core index']
  #allocation1 [shape = 'u32[144,128]{1,0:T(1,128)}', space=vmem, size = 0x12000, scoped, tag = 'internal scratch']
  #allocation2 [shape = 'f32[32,32]{1,0:T(8,128)}', space=vmem, size = 0x4000, scoped, tag = 'scratch operand']
  %s0 = inlined_call_operand.vmem [shape: f32[32,128], index: 0, kind: input, shape index: {}]
  %s1 = inlined_call_operand.vmem [shape: f32[128,32], index: 1, kind: input, shape index: {}]
  %s2 = inlined_call_operand.vmem [shape: f32[1,32], index: 2, kind: input, shape index: {}]
  %s3 = inlined_call_operand.vmem [shape: f32[1,32], index: 3, kind: input, shape index: {}]
  %s4 = inlined_call_operand.vmem [shape: f32[1,32], index: 4, kind: input, shape index: {}]
  %s5 = inlined_call_operand.vmem [shape: f32[32,64], index: 5, kind: input, shape index: {}]
  %s6 = inlined_call_operand.hbm [shape: f32[32,64], index: 6, kind: output, shape index: {}]
  %s7 = sld [smem:[#allocation0]]
  $region42: #{tpu_custom_call.1} parent=0
    _
  %s9 = ssub.s32 1, %s7
  %s10 = scalar_select 0, %s9, %s7
  $region1: #{tpu_custom_call.1} parent=0
    #allocation3 [shape = 'u8[16384]{0}', space=vmem, size = 0x4000, scoped, tag = 'output window, operand 0, single buffered']
    #allocation4 [shape = 's32[1]{0}', space=sflag, size = 0x4, scoped, tag = 'scoped memory for tpu_custom_call.1']
    %11 = vsyncpa [#allocation4], 0
    // Predicated region
    $region2: #{tpu_custom_call.1} parent=1 // pred_check
      _
    $region3: #{tpu_custom_call.1} parent=1 // pred_check_branch
      %13 = sbr.rel (0) target = $region5
    $region4: #{tpu_custom_call.1} parent=1 // pred_region
      _
    $region5: #{tpu_custom_call.1} parent=1 // pred_fallthru
      _
    // Predicated region
    $region6: #{tpu_custom_call.1} parent=1 // pred_check
      _
    $region7: #{tpu_custom_call.1} parent=1 // pred_check_branch
      %15 = sbr.rel (0) target = $region9
    $region8: #{tpu_custom_call.1} parent=1 // pred_region
      _
    $region9: #{tpu_custom_call.1} parent=1 // pred_fallthru
      _
    // Predicated region
    $region10: #{tpu_custom_call.1} parent=1 // pred_check
      _
    $region11: #{tpu_custom_call.1} parent=1 // pred_check_branch
      %17 = sbr.rel (0) target = $region13
    $region12: #{tpu_custom_call.1} parent=1 // pred_region
      _
    $region13: #{tpu_custom_call.1} parent=1 // pred_fallthru
      _
    // Predicated region
    $region14: #{tpu_custom_call.1} parent=1 // pred_check
      _
    $region15: #{tpu_custom_call.1} parent=1 // pred_check_branch
      %19 = sbr.rel (0) target = $region17
    $region16: #{tpu_custom_call.1} parent=1 // pred_region
      _
    $region17: #{tpu_custom_call.1} parent=1 // pred_fallthru
      _
    // Predicated region
    $region18: #{tpu_custom_call.1} parent=1 // pred_check
      _
    $region19: #{tpu_custom_call.1} parent=1 // pred_check_branch
      %21 = sbr.rel (0) target = $region21
    $region20: #{tpu_custom_call.1} parent=1 // pred_region
      _
    $region21: #{tpu_custom_call.1} parent=1 // pred_fallthru
      _
    // Predicated region
    $region22: #{tpu_custom_call.1} parent=1 // pred_check
      _
    $region23: #{tpu_custom_call.1} parent=1 // pred_check_branch
      %23 = sbr.rel (0) target = $region25
    $region24: #{tpu_custom_call.1} parent=1 // pred_region
      _
    $region25: #{tpu_custom_call.1} parent=1 // pred_fallthru
      _
    %p24 = scmp.eq.s32.totalorder 0, 0
    // Predicated region
    $region26: #{tpu_custom_call.1} parent=1 // pred_check
      %p25 = pneg %p24
    $region27: #{tpu_custom_call.1} parent=1 // pred_check_branch
      %27 = sbr.rel (%p25) target = $region29
    $region28: #{tpu_custom_call.1} parent=1 // pred_region
      %vm28 = vcmask 261120
      %29 = vst.msk [vmem:[#allocation2] sm:$0xff] %vm28, 0.0
      %30 = vst.msk [vmem:[#allocation2 + $0x8] sm:$0xff] %vm28, 0.0
      %31 = vst.msk [vmem:[#allocation2 + $0x10] sm:$0xff] %vm28, 0.0
      %32 = vst.msk [vmem:[#allocation2 + $0x18] sm:$0xff] %vm28, 0.0
    $region29: #{tpu_custom_call.1} parent=1 // pred_fallthru
      _
    %v33 = vld [vmem:[#allocation2] sm:$0xff]
    %v34 = vld [vmem:[#allocation2 + $0x8] sm:$0xff]
    %v35 = vld [vmem:[#allocation2 + $0x10] sm:$0xff]
    %v36 = vld [vmem:[#allocation2 + $0x18] sm:$0xff]
    %v37 = vld [vmem:[%s0] sm:$0xff]
    %v38 = vld [vmem:[%s0 + $0x8] sm:$0xff]
    %v39 = vld [vmem:[%s0 + $0x10] sm:$0xff]
    %v40 = vld [vmem:[%s0 + $0x18] sm:$0xff]
    %v41 = vld [vmem:[%s1] sm:$0xff]
    %v42 = vld [vmem:[%s1 + $0x8] sm:$0xff]
    %v43 = vld [vmem:[%s1 + $0x10] sm:$0xff]
    %v44 = vld [vmem:[%s1 + $0x18] sm:$0xff]
    %v45 = vld [vmem:[%s1 + $0x20] sm:$0xff]
    %v46 = vld [vmem:[%s1 + $0x28] sm:$0xff]
    %v47 = vld [vmem:[%s1 + $0x30] sm:$0xff]
    %v48 = vld [vmem:[%s1 + $0x38] sm:$0xff]
    %v49 = vld [vmem:[%s1 + $0x40] sm:$0xff]
    %v50 = vld [vmem:[%s1 + $0x48] sm:$0xff]
    %v51 = vld [vmem:[%s1 + $0x50] sm:$0xff]
    %v52 = vld [vmem:[%s1 + $0x58] sm:$0xff]
    %v53 = vld [vmem:[%s1 + $0x60] sm:$0xff]
    %v54 = vld [vmem:[%s1 + $0x68] sm:$0xff]
    %v55 = vld [vmem:[%s1 + $0x70] sm:$0xff]
    %v56 = vld [vmem:[%s1 + $0x78] sm:$0xff]
    %57 = vmatprep.subr.mxu0 0.0
    %58 = vmatpush1.msra.mxu0 %v56
    %59 = vmatprep.subr.mxu0 0.0
    %60 = vmatpush1.msra.mxu0 %v55
    %61 = vmatprep.subr.mxu0 0.0
    %62 = vmatpush1.msra.mxu0 %v54
    %63 = vmatprep.subr.mxu0 0.0
    %64 = vmatpush1.msra.mxu0 %v53
    %65 = vmatprep.subr.mxu0 0.0
    %66 = vmatpush1.msra.mxu0 %v52
    %67 = vmatprep.subr.mxu0 0.0
    %68 = vmatpush1.msra.mxu0 %v51
    %69 = vmatprep.subr.mxu0 0.0
    %70 = vmatpush1.msra.mxu0 %v50
    %71 = vmatprep.subr.mxu0 0.0
    %72 = vmatpush1.msra.mxu0 %v49
    %73 = vmatprep.subr.mxu0 0.0
    %74 = vmatpush1.msra.mxu0 %v48
    %75 = vmatprep.subr.mxu0 0.0
    %76 = vmatpush1.msra.mxu0 %v47
    %77 = vmatprep.subr.mxu0 0.0
    %78 = vmatpush1.msra.mxu0 %v46
    %79 = vmatprep.subr.mxu0 0.0
    %80 = vmatpush1.msra.mxu0 %v45
    %81 = vmatprep.subr.mxu0 0.0
    %82 = vmatpush1.msra.mxu0 %v44
    %83 = vmatprep.subr.mxu0 0.0
    %84 = vmatpush1.msra.mxu0 %v43
    %85 = vmatprep.subr.mxu0 0.0
    %86 = vmatpush1.msra.mxu0 %v42
    %87 = vmatprep.subr.mxu0 0.0
    %88 = vmatpush1.msra.mxu0 %v41
    %89 = vmatprep.subr.mxu0 0.0
    %90 = vmatpush2.msra.mxu0 0.0
    %91 = vmatprep.subr.mxu0 0.0
    %92 = vmatpush2.msra.mxu0 0.0
    %93 = vmatprep.subr.mxu0 0.0
    %94 = vmatpush2.msra.mxu0 0.0
    %95 = vmatprep.subr.mxu0 0.0
    %96 = vmatpush2.msra.mxu0 0.0
    %97 = vmatprep.subr.mxu0 0.0
    %98 = vmatpush2.msra.mxu0 0.0
    %99 = vmatprep.subr.mxu0 0.0
    %100 = vmatpush2.msra.mxu0 0.0
    %101 = vmatprep.subr.mxu0 0.0
    %102 = vmatpush2.msra.mxu0 0.0
    %103 = vmatprep.subr.mxu0 0.0
    %104 = vmatpush2.msra.mxu0 0.0
    %105 = vmatprep.subr.mxu0 0.0
    %106 = vmatpush2.msra.mxu0 0.0
    %107 = vmatprep.subr.mxu0 0.0
    %108 = vmatpush2.msra.mxu0 0.0
    %109 = vmatprep.subr.mxu0 0.0
    %110 = vmatpush2.msra.mxu0 0.0
    %111 = vmatprep.subr.mxu0 0.0
    %112 = vmatpush2.msra.mxu0 0.0
    %113 = vmatprep.subr.mxu0 0.0
    %114 = vmatpush2.msra.mxu0 0.0
    %115 = vmatprep.subr.mxu0 0.0
    %116 = vmatpush2.msra.mxu0 0.0
    %117 = vmatprep.subr.mxu0 0.0
    %118 = vmatpush2.msra.mxu0 0.0
    %119 = vmatprep.subr.mxu0 0.0
    %120 = vmatpush2.msra.mxu0 0.0
    %121 = vmatprep.mubr.f32.mxu0 0.0
    %122 = vmatmul.mubr.f32.gmra.mxu0 %v37
    %v123 = vpop.f32.mrf.mxu0
    %v124 = vadd.f32 0.0, %v123
    %v125 = vpop.f32.mrf.mxu0
    %126 = vmatprep.mubr.f32.mxu0 0.0
    %127 = vmatmul.mubr.f32.gmra.mxu0 %v38
    %v128 = vpop.f32.mrf.mxu0
    %v129 = vadd.f32 0.0, %v128
    %v130 = vpop.f32.mrf.mxu0
    %131 = vmatprep.mubr.f32.mxu0 0.0
    %132 = vmatmul.mubr.f32.gmra.mxu0 %v39
    %v133 = vpop.f32.mrf.mxu0
    %v134 = vadd.f32 0.0, %v133
    %v135 = vpop.f32.mrf.mxu0
    %136 = vmatprep.mubr.f32.mxu0 0.0
    %137 = vmatmul.mubr.f32.gmra.mxu0 %v40
    %v138 = vpop.f32.mrf.mxu0
    %v139 = vadd.f32 0.0, %v138
    %v140 = vpop.f32.mrf.mxu0
    %141 = vdwg.mxu0
    %v142 = vadd.f32 %v33, %v124
    %v143 = vadd.f32 %v34, %v129
    %v144 = vadd.f32 %v35, %v134
    %v145 = vadd.f32 %v36, %v139
    %vm146 = vcmask 261120
    %147 = vst.msk [vmem:[#allocation2] sm:$0xff] %vm146, %v142
    %148 = vst.msk [vmem:[#allocation2 + $0x8] sm:$0xff] %vm146, %v143
    %149 = vst.msk [vmem:[#allocation2 + $0x10] sm:$0xff] %vm146, %v144
    %150 = vst.msk [vmem:[#allocation2 + $0x18] sm:$0xff] %vm146, %v145
    // Predicated region
    $region30: #{tpu_custom_call.1} parent=1 // pred_check
      %p151 = pneg %p24
    $region31: #{tpu_custom_call.1} parent=1 // pred_check_branch
      %153 = sbr.rel (%p151) target = $region33
    $region32: #{tpu_custom_call.1} parent=1 // pred_region
      %v154 = vld [vmem:[#allocation2] sm:$0xff]
      %v155 = vld [vmem:[#allocation2 + $0x8] sm:$0xff]
      %v156 = vld [vmem:[#allocation2 + $0x10] sm:$0xff]
      %v157 = vld [vmem:[#allocation2 + $0x18] sm:$0xff]
      %v158 = vld [vmem:[%s2] sm:$0x1]
      %v160 = vlaneseq
      %v161 = vshrl.u32 %v160, 7
      %v162 = vsub.s32 0, %v161
      %v163 = vrot.slane %v158, %v162
      %v165 = vadd.f32 %v154, %v163
      %v166 = vadd.f32 %v155, %v163
      %v167 = vadd.f32 %v156, %v163
      %v168 = vadd.f32 %v157, %v163
      %v169 = vsel %vm146, %v165, 0.0
      %170 = vadd.xlane.f32.xlu0 %v169
      %v171 = vpop.xlane.xlu0 %170
      %v172 = vsel %vm146, %v166, 0.0
      %173 = vadd.xlane.f32.xlu0 %v172
      %v174 = vpop.xlane.xlu0 %173
      %v175 = vsel %vm146, %v167, 0.0
      %176 = vadd.xlane.f32.xlu0 %v175
      %v177 = vpop.xlane.xlu0 %176
      %v178 = vsel %vm146, %v168, 0.0
      %179 = vadd.xlane.f32.xlu0 %v178
      %v180 = vpop.xlane.xlu0 %179
      %v181 = vrcp.pop 32.0
      %v182 = vmul.f32 %v171, %v181
      %v183 = vmul.f32 %v174, %v181
      %v184 = vmul.f32 %v177, %v181
      %v185 = vmul.f32 %v180, %v181
      %v186 = vsub.f32 %v165, %v182
      %v187 = vsub.f32 %v166, %v183
      %v188 = vsub.f32 %v167, %v184
      %v189 = vsub.f32 %v168, %v185
      %v190 = vmul.f32 %v186, %v186
      %v191 = vmul.f32 %v187, %v187
      %v192 = vmul.f32 %v188, %v188
      %v193 = vmul.f32 %v189, %v189
      %v194 = vsel %vm146, %v190, 0.0
      %195 = vadd.xlane.f32.xlu0 %v194
      %v196 = vpop.xlane.xlu0 %195
      %v197 = vsel %vm146, %v191, 0.0
      %198 = vadd.xlane.f32.xlu0 %v197
      %v199 = vpop.xlane.xlu0 %198
      %v200 = vsel %vm146, %v192, 0.0
      %201 = vadd.xlane.f32.xlu0 %v200
      %v202 = vpop.xlane.xlu0 %201
      %v203 = vsel %vm146, %v193, 0.0
      %204 = vadd.xlane.f32.xlu0 %v203
      %v205 = vpop.xlane.xlu0 %204
      %v206 = vmul.f32 %v196, %v181
      %v207 = vmul.f32 %v199, %v181
      %v208 = vmul.f32 %v202, %v181
      %v209 = vmul.f32 %v205, %v181
      %v210 = vadd.f32 %v206, 1e-05
      %v211 = vadd.f32 %v207, 1e-05
      %v212 = vadd.f32 %v208, 1e-05
      %v213 = vadd.f32 %v209, 1e-05
      %v214 = vrsqrt.pop %v210
      %v215 = vrsqrt.pop %v211
      %v216 = vrsqrt.pop %v212
      %v217 = vrsqrt.pop %v213
      %v218 = vmul.f32 %v186, %v214
      %v219 = vmul.f32 %v187, %v215
      %v220 = vmul.f32 %v188, %v216
      %v221 = vmul.f32 %v189, %v217
      %v222 = vld [vmem:[%s3] sm:$0x1]
      %v224 = vlaneseq
      %v225 = vshrl.u32 %v224, 7
      %v226 = vsub.s32 0, %v225
      %v227 = vrot.slane %v222, %v226
      %v229 = vmul.f32 %v218, %v227
      %v230 = vmul.f32 %v219, %v227
      %v231 = vmul.f32 %v220, %v227
      %v232 = vmul.f32 %v221, %v227
      %v233 = vld [vmem:[%s4] sm:$0x1]
      %v235 = vlaneseq
      %v236 = vshrl.u32 %v235, 7
      %v237 = vsub.s32 0, %v236
      %v238 = vrot.slane %v233, %v237
      %v240 = vadd.f32 %v229, %v238
      %v241 = vadd.f32 %v230, %v238
      %v242 = vadd.f32 %v231, %v238
      %v243 = vadd.f32 %v232, %v238
      %v244 = vld [vmem:[%s5] sm:$0xff]
      %v245 = vld [vmem:[%s5 + $0x8] sm:$0xff]
      %v246 = vld [vmem:[%s5 + $0x10] sm:$0xff]
      %v247 = vld [vmem:[%s5 + $0x18] sm:$0xff]
      %v249 = vsel %vm146, %v240, 0
      %v252 = vsel %vm146, %v241, 0
      %v255 = vsel %vm146, %v242, 0
      %v258 = vsel %vm146, %v243, 0
      %260 = vmatprep.subr.mxu0 0.0
      %261 = vmatpush1.msra.mxu0 0.0
      %262 = vmatprep.subr.mxu0 0.0
      %263 = vmatpush1.msra.mxu0 0.0
      %264 = vmatprep.subr.mxu0 0.0
      %265 = vmatpush1.msra.mxu0 0.0
      %266 = vmatprep.subr.mxu0 0.0
      %267 = vmatpush1.msra.mxu0 0.0
      %268 = vmatprep.subr.mxu0 0.0
      %269 = vmatpush1.msra.mxu0 0.0
      %270 = vmatprep.subr.mxu0 0.0
      %271 = vmatpush1.msra.mxu0 0.0
      %272 = vmatprep.subr.mxu0 0.0
      %273 = vmatpush1.msra.mxu0 0.0
      %274 = vmatprep.subr.mxu0 0.0
      %275 = vmatpush1.msra.mxu0 0.0
      %276 = vmatprep.subr.mxu0 0.0
      %277 = vmatpush1.msra.mxu0 0.0
      %278 = vmatprep.subr.mxu0 0.0
      %279 = vmatpush1.msra.mxu0 0.0
      %280 = vmatprep.subr.mxu0 0.0
      %281 = vmatpush1.msra.mxu0 0.0
      %282 = vmatprep.subr.mxu0 0.0
      %283 = vmatpush1.msra.mxu0 0.0
      %284 = vmatprep.subr.mxu0 0.0
      %285 = vmatpush1.msra.mxu0 %v247
      %286 = vmatprep.subr.mxu0 0.0
      %287 = vmatpush1.msra.mxu0 %v246
      %288 = vmatprep.subr.mxu0 0.0
      %289 = vmatpush1.msra.mxu0 %v245
      %290 = vmatprep.subr.mxu0 0.0
      %291 = vmatpush1.msra.mxu0 %v244
      %292 = vmatprep.subr.mxu0 0.0
      %293 = vmatpush2.msra.mxu0 0.0
      %294 = vmatprep.subr.mxu0 0.0
      %295 = vmatpush2.msra.mxu0 0.0
      %296 = vmatprep.subr.mxu0 0.0
      %297 = vmatpush2.msra.mxu0 0.0
      %298 = vmatprep.subr.mxu0 0.0
      %299 = vmatpush2.msra.mxu0 0.0
      %300 = vmatprep.subr.mxu0 0.0
      %301 = vmatpush2.msra.mxu0 0.0
      %302 = vmatprep.subr.mxu0 0.0
      %303 = vmatpush2.msra.mxu0 0.0
      %304 = vmatprep.subr.mxu0 0.0
      %305 = vmatpush2.msra.mxu0 0.0
      %306 = vmatprep.subr.mxu0 0.0
      %307 = vmatpush2.msra.mxu0 0.0
      %308 = vmatprep.subr.mxu0 0.0
      %309 = vmatpush2.msra.mxu0 0.0
      %310 = vmatprep.subr.mxu0 0.0
      %311 = vmatpush2.msra.mxu0 0.0
      %312 = vmatprep.subr.mxu0 0.0
      %313 = vmatpush2.msra.mxu0 0.0
      %314 = vmatprep.subr.mxu0 0.0
      %315 = vmatpush2.msra.mxu0 0.0
      %316 = vmatprep.subr.mxu0 0.0
      %317 = vmatpush2.msra.mxu0 0.0
      %318 = vmatprep.subr.mxu0 0.0
      %319 = vmatpush2.msra.mxu0 0.0
      %320 = vmatprep.subr.mxu0 0.0
      %321 = vmatpush2.msra.mxu0 0.0
      %322 = vmatprep.subr.mxu0 0.0
      %323 = vmatpush2.msra.mxu0 0.0
      %324 = vmatprep.mubr.f32.mxu0 0.0
      %325 = vmatmul.mubr.f32.gmra.mxu0 %v249
      %v326 = vpop.f32.mrf.mxu0
      %v327 = vadd.f32 0.0, %v326
      %v328 = vpop.f32.mrf.mxu0
      %329 = vmatprep.mubr.f32.mxu0 0.0
      %330 = vmatmul.mubr.f32.gmra.mxu0 %v252
      %v331 = vpop.f32.mrf.mxu0
      %v332 = vadd.f32 0.0, %v331
      %v333 = vpop.f32.mrf.mxu0
      %334 = vmatprep.mubr.f32.mxu0 0.0
      %335 = vmatmul.mubr.f32.gmra.mxu0 %v255
      %v336 = vpop.f32.mrf.mxu0
      %v337 = vadd.f32 0.0, %v336
      %v338 = vpop.f32.mrf.mxu0
      %339 = vmatprep.mubr.f32.mxu0 0.0
      %340 = vmatmul.mubr.f32.gmra.mxu0 %v258
      %v341 = vpop.f32.mrf.mxu0
      %v342 = vadd.f32 0.0, %v341
      %v343 = vpop.f32.mrf.mxu0
      %344 = vdwg.mxu0
      %vm345 = vcmask 523264
      %346 = vst.msk [vmem:[#allocation3] sm:$0xff] %vm345, %v327
      %347 = vst.msk [vmem:[#allocation3 + $0x8] sm:$0xff] %vm345, %v332
      %348 = vst.msk [vmem:[#allocation3 + $0x10] sm:$0xff] %vm345, %v337
      %349 = vst.msk [vmem:[#allocation3 + $0x18] sm:$0xff] %vm345, %v342
    $region33: #{tpu_custom_call.1} parent=1 // pred_fallthru
      _
    // Predicated region
    $region34: #{tpu_custom_call.1} parent=1 // pred_check
      _
    $region35: #{tpu_custom_call.1} parent=1 // pred_check_branch
      %351 = sbr.rel (0) target = $region37
    $region36: #{tpu_custom_call.1} parent=1 // pred_region
      %s353 = ssub.s32 512, 512
      %354 = vsyncadd [#allocation4], %s353
      %s355 = sshll.u32 [#allocation3], 4
      %s356 = int_to_ptr.vmem [resolvable:$true] %s355
      %361 = dma.vmem_to_hbm [thread:$0]  %s356, 512, %s6, [#allocation4], 128, 128, 8
    $region37: #{tpu_custom_call.1} parent=1 // pred_fallthru
      _
    // Predicated region
    $region38: #{tpu_custom_call.1} parent=1 // pred_check
      _
    $region39: #{tpu_custom_call.1} parent=1 // pred_check_branch
      %363 = sbr.rel (0) target = $region41
    $region40: #{tpu_custom_call.1} parent=1 // pred_region
      %364 = dma.done [#allocation4], 512
    $region41: #{tpu_custom_call.1} parent=1 // pred_fallthru
      _
    %365 = vsyncpa [#allocation4], 1

</llo_original>
